<compile_context>
chip_gen: v5e
topology: v5e:2x2
jax: 0.10.0
libtpu: 0.0.40
codegen_flags: <defaults>
</compile_context>

<pallas_src>
import functools

import jax
import jax.numpy as jnp
from jax import lax
from jax.experimental import pallas as pl
from jax.experimental.pallas import tpu as pltpu


def _toy_fwd_kernel(x_ref, w_ref, b_ref, o_ref, *, compute_dtype):
    # Fused per-tile forward: out = relu((x @ W) @ W.T + bias).
    x = x_ref[...].astype(compute_dtype)
    w = w_ref[...].astype(compute_dtype)
    # h = x @ W  -> [tm, d_model], f32 accumulation on the MXU.
    h = jnp.dot(x, w, preferred_element_type=jnp.float32)
    # out = h @ W.T without materializing a transpose: contract dim 1 of both
    # operands, feeding the MXU directly (no XLU vxpose, no scratch).
    acc = lax.dot_general(
        h.astype(compute_dtype), w,
        dimension_numbers=(((1,), (1,)), ((), ())),
        preferred_element_type=jnp.float32,
    )
    o_ref[...] = jnp.maximum(acc + b_ref[...], 0.0).astype(o_ref.dtype)


def _choose_tm(batch):
    # Small batches: one full-batch tile (grid=(1,), no per-step overhead).
    # "Equal to full array dim" satisfies the (8,128) BlockSpec rule even for
    # batches that are not multiples of 8.
    if batch <= 256:
        return batch
    # Larger batches: cap tiles at 512 rows (~1.3 MiB double-buffered VMEM on
    # every generation, well under v7x's 64 MiB and the default scoped limits)
    # and split into >=2 "parallel" grid steps so v7x's two TensorCores both
    # get work; 256-512 row tiles amortize the ~0.35 us per-step overhead.
    return min(512, pl.cdiv(pl.cdiv(batch, 2), 8) * 8)


def fast_toy_model_forward(x, w_tr, bias, *, tm=None, compute_dtype=jnp.float32):
    """relu(x @ W_tr @ W_tr.T + bias) as a single fused Pallas kernel.

    x:    [B, n_features]       float32
    w_tr: [n_features, d_model] float32
    bias: [n_features]          float32
    compute_dtype: matmul operand dtype (bf16 is a v6e/v7x MXU lever; the cast
                   happens in-kernel so it adds no HBM traffic; accumulation,
                   bias add and ReLU stay f32).
    returns [B, n_features] with x.dtype
    """
    B, n_features = x.shape
    nf_w, d_model = w_tr.shape
    assert nf_w == n_features
    assert bias.shape == (n_features,)
    out_dtype = x.dtype

    if tm is None:
        tm = _choose_tm(B)
    grid = (pl.cdiv(B, tm),)

    bias2d = bias.astype(jnp.float32).reshape(1, n_features)

    # Advisory cost hint: two B x nf x d_model matmuls; traffic dominated by
    # one read of x and one write of out (the op is HBM / launch bound).
    cost = pl.CostEstimate(
        flops=4 * B * n_features * d_model,
        transcendentals=0,
        bytes_accessed=(
            B * n_features * jnp.dtype(x.dtype).itemsize
            + B * n_features * jnp.dtype(out_dtype).itemsize
            + n_features * d_model * jnp.dtype(w_tr.dtype).itemsize
            + n_features * 4
        ),
    )

    kernel = functools.partial(_toy_fwd_kernel, compute_dtype=compute_dtype)

    out = pl.pallas_call(
        kernel,
        out_shape=jax.ShapeDtypeStruct((B, n_features), out_dtype),
        grid_spec=pltpu.PrefetchScalarGridSpec(
            num_scalar_prefetch=0,
            grid=grid,
            in_specs=[
                pl.BlockSpec((tm, n_features), lambda i: (i, 0)),          # x tile
                pl.BlockSpec((n_features, d_model), lambda i: (0, 0)),     # W_tr (resident)
                pl.BlockSpec((1, n_features), lambda i: (0, 0)),           # bias
            ],
            out_specs=pl.BlockSpec((tm, n_features), lambda i: (i, 0)),
        ),
        compiler_params=pltpu.CompilerParams(
            dimension_semantics=("parallel",),
        ),
        cost_estimate=cost,
    )(x, w_tr, bias2d)

    return out


if __name__ == "__main__":
    # Shapes consistent with the module: n_features = 128, d_model = 64.
    n_features, d_model = 128, 64

    key = jax.random.PRNGKey(0)
    kx, kw, kx2 = jax.random.split(key, 3)

    # Deterministic Xavier-normal init for W_tr ([n_features, d_model]):
    # std = sqrt(2 / (fan_in + fan_out)), zero bias, as in the module.
    xavier_std = (2.0 / (n_features + d_model)) ** 0.5
    w_tr = xavier_std * jax.random.normal(kw, (n_features, d_model), dtype=jnp.float32)
    bias = jnp.zeros((n_features,), dtype=jnp.float32)

    def ref_fwd(xx):
        return jnp.maximum(xx @ w_tr @ w_tr.T + bias[None, :], 0.0)

    # --- aligned batch -------------------------------------------------------
    # TODO(synk): the reference treats x as COO-sparse; dense x @ W_tr is
    # numerically identical, so no sparse gather kernel is implemented.
    B = 128
    x = jax.random.normal(kx, (B, n_features), dtype=jnp.float32)
    out = jax.block_until_ready(fast_toy_model_forward(x, w_tr, bias))
    assert out.shape == (B, n_features)
    assert jnp.allclose(out, ref_fwd(x), atol=1e-4, rtol=1e-4)

    # --- ragged batch: exercises Pallas boundary-tile masking (no pad/slice) --
    B2 = 100
    x2 = jax.random.normal(kx2, (B2, n_features), dtype=jnp.float32)
    out2 = jax.block_until_ready(fast_toy_model_forward(x2, w_tr, bias))
    assert out2.shape == (B2, n_features)
    assert jnp.allclose(out2, ref_fwd(x2), atol=1e-4, rtol=1e-4)

    # --- bf16-operand path (cast happens in-kernel; no extra HBM pass) -------
    out_bf16 = jax.block_until_ready(
        fast_toy_model_forward(x, w_tr, bias, compute_dtype=jnp.bfloat16)
    )
    assert jnp.allclose(out_bf16, ref_fwd(x), atol=5e-2, rtol=5e-2)

    print("KERNEL_OK")
</pallas_src>

<mosaic_0001>
module attributes {stable_mosaic.version = 11 : i64} {
  func.func @_toy_fwd_kernel(%arg0: i32, %arg1: memref<128x128xf32, #tpu.memory_space<vmem>>, %arg2: memref<128x64xf32, #tpu.memory_space<vmem>>, %arg3: memref<1x128xf32, #tpu.memory_space<vmem>>, %arg4: memref<128x128xf32, #tpu.memory_space<vmem>>) attributes {dimension_semantics = [#tpu.dimension_semantics<parallel>], iteration_bounds = array<i64: 1>, scalar_prefetch = 0 : i64, scratch_operands = 0 : i64, tpu.core_type = #tpu.core_type<tc>, window_params = [{transform_indices = @transform_0, window_bounds = array<i64: 128, 128>}, {pipeline_mode = #tpu.pipeline_mode<synchronous>, transform_indices = @transform_1, window_bounds = array<i64: 128, 64>}, {pipeline_mode = #tpu.pipeline_mode<synchronous>, transform_indices = @transform_2, window_bounds = array<i64: 1, 128>}, {transform_indices = @transform_3, window_bounds = array<i64: 128, 128>}]} {
    %c0 = arith.constant 0 : index
    %c0_0 = arith.constant 0 : index
    %0 = vector.load %arg1[%c0, %c0_0] : memref<128x128xf32, #tpu.memory_space<vmem>>, vector<128x128xf32>
    %c0_1 = arith.constant 0 : index
    %c0_2 = arith.constant 0 : index
    %1 = vector.load %arg2[%c0_1, %c0_2] : memref<128x64xf32, #tpu.memory_space<vmem>>, vector<128x64xf32>
    %cst = arith.constant dense<0.000000e+00> : vector<128x64xf32>
    %2 = tpu.matmul %0, %1, %cst {dimension_numbers = #tpu.dot_dimension_numbers<[1], [0], [0], [1], [0, 0, 1, 1], [], []>} : vector<128x128xf32>, vector<128x64xf32>, vector<128x64xf32> -> vector<128x64xf32>
    %cst_3 = arith.constant dense<0.000000e+00> : vector<128x128xf32>
    %3 = tpu.matmul %2, %1, %cst_3 {dimension_numbers = #tpu.dot_dimension_numbers<[1], [1], [0], [0], [0, 0, 1, 0], [], []>} : vector<128x64xf32>, vector<128x64xf32>, vector<128x128xf32> -> vector<128x128xf32>
    %c0_4 = arith.constant 0 : index
    %c0_5 = arith.constant 0 : index
    %4 = vector.load %arg3[%c0_4, %c0_5] : memref<1x128xf32, #tpu.memory_space<vmem>>, vector<1x128xf32>
    %5 = vector.broadcast %4 : vector<1x128xf32> to vector<128x128xf32>
    %6 = arith.addf %3, %5 : vector<128x128xf32>
    %cst_6 = arith.constant 0.000000e+00 : f32
    %7 = vector.broadcast %cst_6 : f32 to vector<128x128xf32>
    %8 = arith.maximumf %6, %7 : vector<128x128xf32>
    %c0_7 = arith.constant 0 : index
    %c0_8 = arith.constant 0 : index
    %9 = vector.load %arg4[%c0_7, %c0_8] : memref<128x128xf32, #tpu.memory_space<vmem>>, vector<128x128xf32>
    tpu.vector_store %arg4[%c0_7, %c0_8], %8 {strides = array<i32>} : memref<128x128xf32, #tpu.memory_space<vmem>>, vector<128x128xf32>,
    return
  }
  func.func @transform_0(%arg0: i32) -> (i32, i32) {
    %c0_i32 = arith.constant 0 : i32
    %c0_i32_0 = arith.constant 0 : i32
    return %arg0, %c0_i32 : i32, i32
  }
  func.func @transform_1(%arg0: i32) -> (i32, i32) {
    %c0_i32 = arith.constant 0 : i32
    %c0_i32_0 = arith.constant 0 : i32
    %c0_i32_1 = arith.constant 0 : i32
    return %c0_i32, %c0_i32_0 : i32, i32
  }
  func.func @transform_2(%arg0: i32) -> (i32, i32) {
    %c0_i32 = arith.constant 0 : i32
    %c0_i32_0 = arith.constant 0 : i32
    %c0_i32_1 = arith.constant 0 : i32
    return %c0_i32, %c0_i32_0 : i32, i32
  }
  func.func @transform_3(%arg0: i32) -> (i32, i32) {
    %c0_i32 = arith.constant 0 : i32
    %c0_i32_0 = arith.constant 0 : i32
    return %arg0, %c0_i32 : i32, i32
  }
}

</mosaic_0001>

<llo_original>
// kernel: tpu_custom_call.1
$region0: #{tpu_custom_call.1}
  #allocation0 [shape = 'u32[]', space=smem, size = 0x4, offset = 0x4, fixed_abs, tag = 'smem constant byte address 0x4 - core index']
  #allocation1 [shape = 'u32[72,128]{1,0:T(1,128)}', space=vmem, size = 0x9000, scoped, tag = 'internal scratch']
  %s0 = inlined_call_operand.vmem [shape: f32[128,128], index: 0, kind: input, shape index: {}]
  %s1 = inlined_call_operand.vmem [shape: f32[128,64], index: 1, kind: input, shape index: {}]
  %s2 = inlined_call_operand.vmem [shape: f32[1,128], index: 2, kind: input, shape index: {}]
  %s3 = inlined_call_operand.hbm [shape: f32[128,128], index: 3, kind: output, shape index: {}]
  %s4 = sld [smem:[#allocation0]]
  $region22: #{tpu_custom_call.1} parent=0
    _
  %s6 = ssub.s32 1, %s4
  %s7 = scalar_select 0, %s6, %s4
  $region1: #{tpu_custom_call.1} parent=0
    #allocation2 [shape = 'u8[65536]{0}', space=vmem, size = 0x10000, scoped, tag = 'output window, operand 0, single buffered']
    #allocation3 [shape = 's32[1]{0}', space=sflag, size = 0x4, scoped, tag = 'scoped memory for tpu_custom_call.1']
    %8 = vsyncpa [#allocation3], 0
    // Predicated region
    $region2: #{tpu_custom_call.1} parent=1 // pred_check
      _
    $region3: #{tpu_custom_call.1} parent=1 // pred_check_branch
      %10 = sbr.rel (0) target = $region5
    $region4: #{tpu_custom_call.1} parent=1 // pred_region
      _
    $region5: #{tpu_custom_call.1} parent=1 // pred_fallthru
      _
    // Predicated region
    $region6: #{tpu_custom_call.1} parent=1 // pred_check
      _
    $region7: #{tpu_custom_call.1} parent=1 // pred_check_branch
      %12 = sbr.rel (0) target = $region9
    $region8: #{tpu_custom_call.1} parent=1 // pred_region
      _
    $region9: #{tpu_custom_call.1} parent=1 // pred_fallthru
      _
    // Predicated region
    $region10: #{tpu_custom_call.1} parent=1 // pred_check
      _
    $region11: #{tpu_custom_call.1} parent=1 // pred_check_branch
      %14 = sbr.rel (0) target = $region13
    $region12: #{tpu_custom_call.1} parent=1 // pred_region
      _
    $region13: #{tpu_custom_call.1} parent=1 // pred_fallthru
      _
    %v15 = vld [vmem:[%s0] sm:$0xff]
    %v16 = vld [vmem:[%s0 + $0x8] sm:$0xff]
    %v17 = vld [vmem:[%s0 + $0x10] sm:$0xff]
    %v18 = vld [vmem:[%s0 + $0x18] sm:$0xff]
    %v19 = vld [vmem:[%s0 + $0x20] sm:$0xff]
    %v20 = vld [vmem:[%s0 + $0x28] sm:$0xff]
    %v21 = vld [vmem:[%s0 + $0x30] sm:$0xff]
    %v22 = vld [vmem:[%s0 + $0x38] sm:$0xff]
    %v23 = vld [vmem:[%s0 + $0x40] sm:$0xff]
    %v24 = vld [vmem:[%s0 + $0x48] sm:$0xff]
    %v25 = vld [vmem:[%s0 + $0x50] sm:$0xff]
    %v26 = vld [vmem:[%s0 + $0x58] sm:$0xff]
    %v27 = vld [vmem:[%s0 + $0x60] sm:$0xff]
    %v28 = vld [vmem:[%s0 + $0x68] sm:$0xff]
    %v29 = vld [vmem:[%s0 + $0x70] sm:$0xff]
    %v30 = vld [vmem:[%s0 + $0x78] sm:$0xff]
    %v31 = vld [vmem:[%s1] sm:$0xff]
    %v32 = vld [vmem:[%s1 + $0x8] sm:$0xff]
    %v33 = vld [vmem:[%s1 + $0x10] sm:$0xff]
    %v34 = vld [vmem:[%s1 + $0x18] sm:$0xff]
    %v35 = vld [vmem:[%s1 + $0x20] sm:$0xff]
    %v36 = vld [vmem:[%s1 + $0x28] sm:$0xff]
    %v37 = vld [vmem:[%s1 + $0x30] sm:$0xff]
    %v38 = vld [vmem:[%s1 + $0x38] sm:$0xff]
    %v39 = vld [vmem:[%s1 + $0x40] sm:$0xff]
    %v40 = vld [vmem:[%s1 + $0x48] sm:$0xff]
    %v41 = vld [vmem:[%s1 + $0x50] sm:$0xff]
    %v42 = vld [vmem:[%s1 + $0x58] sm:$0xff]
    %v43 = vld [vmem:[%s1 + $0x60] sm:$0xff]
    %v44 = vld [vmem:[%s1 + $0x68] sm:$0xff]
    %v45 = vld [vmem:[%s1 + $0x70] sm:$0xff]
    %v46 = vld [vmem:[%s1 + $0x78] sm:$0xff]
    %47 = vmatpush.msra.mxu0 %v46
    %48 = vmatpush.msra.mxu0 %v45
    %49 = vmatpush.msra.mxu0 %v44
    %50 = vmatpush.msra.mxu0 %v43
    %51 = vmatpush.msra.mxu0 %v42
    %52 = vmatpush.msra.mxu0 %v41
    %53 = vmatpush.msra.mxu0 %v40
    %54 = vmatpush.msra.mxu0 %v39
    %55 = vmatpush.msra.mxu0 %v38
    %56 = vmatpush.msra.mxu0 %v37
    %57 = vmatpush.msra.mxu0 %v36
    %58 = vmatpush.msra.mxu0 %v35
    %59 = vmatpush.msra.mxu0 %v34
    %60 = vmatpush.msra.mxu0 %v33
    %61 = vmatpush.msra.mxu0 %v32
    %62 = vmatpush.msra.mxu0 %v31
    %63 = vmatmul.f32.gmra.mxu0 %v15
    %v64 = vpop.f32.mrf.mxu0
    %v65 = vadd.f32 0.0, %v64
    %66 = vmatmul.f32.gmra.mxu0 %v16
    %v67 = vpop.f32.mrf.mxu0
    %v68 = vadd.f32 0.0, %v67
    %69 = vmatmul.f32.gmra.mxu0 %v17
    %v70 = vpop.f32.mrf.mxu0
    %v71 = vadd.f32 0.0, %v70
    %72 = vmatmul.f32.gmra.mxu0 %v18
    %v73 = vpop.f32.mrf.mxu0
    %v74 = vadd.f32 0.0, %v73
    %75 = vmatmul.f32.gmra.mxu0 %v19
    %v76 = vpop.f32.mrf.mxu0
    %v77 = vadd.f32 0.0, %v76
    %78 = vmatmul.f32.gmra.mxu0 %v20
    %v79 = vpop.f32.mrf.mxu0
    %v80 = vadd.f32 0.0, %v79
    %81 = vmatmul.f32.gmra.mxu0 %v21
    %v82 = vpop.f32.mrf.mxu0
    %v83 = vadd.f32 0.0, %v82
    %84 = vmatmul.f32.gmra.mxu0 %v22
    %v85 = vpop.f32.mrf.mxu0
    %v86 = vadd.f32 0.0, %v85
    %87 = vmatmul.f32.gmra.mxu0 %v23
    %v88 = vpop.f32.mrf.mxu0
    %v89 = vadd.f32 0.0, %v88
    %90 = vmatmul.f32.gmra.mxu0 %v24
    %v91 = vpop.f32.mrf.mxu0
    %v92 = vadd.f32 0.0, %v91
    %93 = vmatmul.f32.gmra.mxu0 %v25
    %v94 = vpop.f32.mrf.mxu0
    %v95 = vadd.f32 0.0, %v94
    %96 = vmatmul.f32.gmra.mxu0 %v26
    %v97 = vpop.f32.mrf.mxu0
    %v98 = vadd.f32 0.0, %v97
    %99 = vmatmul.f32.gmra.mxu0 %v27
    %v100 = vpop.f32.mrf.mxu0
    %v101 = vadd.f32 0.0, %v100
    %102 = vmatmul.f32.gmra.mxu0 %v28
    %v103 = vpop.f32.mrf.mxu0
    %v104 = vadd.f32 0.0, %v103
    %105 = vmatmul.f32.gmra.mxu0 %v29
    %v106 = vpop.f32.mrf.mxu0
    %v107 = vadd.f32 0.0, %v106
    %108 = vmatmul.f32.gmra.mxu0 %v30
    %v109 = vpop.f32.mrf.mxu0
    %v110 = vadd.f32 0.0, %v109
    %111 = vdwg.mxu0
    %v112 = vld [vmem:[%s2] sm:$0x1]
    %v114 = vperm.slane %v112, 0
    %vm116 = vcmask 523264
    %v118 = vsel %vm116, %v65, 0
    %v121 = vsel %vm116, %v68, 0
    %v124 = vsel %vm116, %v71, 0
    %v127 = vsel %vm116, %v74, 0
    %v130 = vsel %vm116, %v77, 0
    %v133 = vsel %vm116, %v80, 0
    %v136 = vsel %vm116, %v83, 0
    %v139 = vsel %vm116, %v86, 0
    %v142 = vsel %vm116, %v89, 0
    %v145 = vsel %vm116, %v92, 0
    %v148 = vsel %vm116, %v95, 0
    %v151 = vsel %vm116, %v98, 0
    %v154 = vsel %vm116, %v101, 0
    %v157 = vsel %vm116, %v104, 0
    %v160 = vsel %vm116, %v107, 0
    %v163 = vsel %vm116, %v110, 0
    %v166 = vsel %vm116, %v31, 0
    %v169 = vsel %vm116, %v32, 0
    %v172 = vsel %vm116, %v33, 0
    %v175 = vsel %vm116, %v34, 0
    %v178 = vsel %vm116, %v35, 0
    %v181 = vsel %vm116, %v36, 0
    %v184 = vsel %vm116, %v37, 0
    %v187 = vsel %vm116, %v38, 0
    %v190 = vsel %vm116, %v39, 0
    %v193 = vsel %vm116, %v40, 0
    %v196 = vsel %vm116, %v41, 0
    %v199 = vsel %vm116, %v42, 0
    %v202 = vsel %vm116, %v43, 0
    %v205 = vsel %vm116, %v44, 0
    %v208 = vsel %vm116, %v45, 0
    %v211 = vsel %vm116, %v46, 0
    %213 = vmatpush.xpose.msra.mxu0 %v211
    %214 = vmatpush.xpose.msra.mxu0 %v208
    %215 = vmatpush.xpose.msra.mxu0 %v205
    %216 = vmatpush.xpose.msra.mxu0 %v202
    %217 = vmatpush.xpose.msra.mxu0 %v199
    %218 = vmatpush.xpose.msra.mxu0 %v196
    %219 = vmatpush.xpose.msra.mxu0 %v193
    %220 = vmatpush.xpose.msra.mxu0 %v190
    %221 = vmatpush.xpose.msra.mxu0 %v187
    %222 = vmatpush.xpose.msra.mxu0 %v184
    %223 = vmatpush.xpose.msra.mxu0 %v181
    %224 = vmatpush.xpose.msra.mxu0 %v178
    %225 = vmatpush.xpose.msra.mxu0 %v175
    %226 = vmatpush.xpose.msra.mxu0 %v172
    %227 = vmatpush.xpose.msra.mxu0 %v169
    %228 = vmatpush.xpose.msra.mxu0 %v166
    %229 = vmatmul.f32.gmra.mxu0 %v118
    %v230 = vpop.f32.mrf.mxu0
    %v231 = vadd.f32 %v114, %v230
    %232 = vmatmul.f32.gmra.mxu0 %v121
    %v233 = vpop.f32.mrf.mxu0
    %v234 = vadd.f32 %v114, %v233
    %235 = vmatmul.f32.gmra.mxu0 %v124
    %v236 = vpop.f32.mrf.mxu0
    %v237 = vadd.f32 %v114, %v236
    %238 = vmatmul.f32.gmra.mxu0 %v127
    %v239 = vpop.f32.mrf.mxu0
    %v240 = vadd.f32 %v114, %v239
    %241 = vmatmul.f32.gmra.mxu0 %v130
    %v242 = vpop.f32.mrf.mxu0
    %v243 = vadd.f32 %v114, %v242
    %244 = vmatmul.f32.gmra.mxu0 %v133
    %v245 = vpop.f32.mrf.mxu0
    %v246 = vadd.f32 %v114, %v245
    %247 = vmatmul.f32.gmra.mxu0 %v136
    %v248 = vpop.f32.mrf.mxu0
    %v249 = vadd.f32 %v114, %v248
    %250 = vmatmul.f32.gmra.mxu0 %v139
    %v251 = vpop.f32.mrf.mxu0
    %v252 = vadd.f32 %v114, %v251
    %253 = vmatmul.f32.gmra.mxu0 %v142
    %v254 = vpop.f32.mrf.mxu0
    %v255 = vadd.f32 %v114, %v254
    %256 = vmatmul.f32.gmra.mxu0 %v145
    %v257 = vpop.f32.mrf.mxu0
    %v258 = vadd.f32 %v114, %v257
    %259 = vmatmul.f32.gmra.mxu0 %v148
    %v260 = vpop.f32.mrf.mxu0
    %v261 = vadd.f32 %v114, %v260
    %262 = vmatmul.f32.gmra.mxu0 %v151
    %v263 = vpop.f32.mrf.mxu0
    %v264 = vadd.f32 %v114, %v263
    %265 = vmatmul.f32.gmra.mxu0 %v154
    %v266 = vpop.f32.mrf.mxu0
    %v267 = vadd.f32 %v114, %v266
    %268 = vmatmul.f32.gmra.mxu0 %v157
    %v269 = vpop.f32.mrf.mxu0
    %v270 = vadd.f32 %v114, %v269
    %271 = vmatmul.f32.gmra.mxu0 %v160
    %v272 = vpop.f32.mrf.mxu0
    %v273 = vadd.f32 %v114, %v272
    %274 = vmatmul.f32.gmra.mxu0 %v163
    %v275 = vpop.f32.mrf.mxu0
    %v276 = vadd.f32 %v114, %v275
    %277 = vdwg.mxu0
    %v278 = vmax.f32 %v231, 0.0
    %v279 = vmax.f32 %v234, 0.0
    %v280 = vmax.f32 %v237, 0.0
    %v281 = vmax.f32 %v240, 0.0
    %v282 = vmax.f32 %v243, 0.0
    %v283 = vmax.f32 %v246, 0.0
    %v284 = vmax.f32 %v249, 0.0
    %v285 = vmax.f32 %v252, 0.0
    %v286 = vmax.f32 %v255, 0.0
    %v287 = vmax.f32 %v258, 0.0
    %v288 = vmax.f32 %v261, 0.0
    %v289 = vmax.f32 %v264, 0.0
    %v290 = vmax.f32 %v267, 0.0
    %v291 = vmax.f32 %v270, 0.0
    %v292 = vmax.f32 %v273, 0.0
    %v293 = vmax.f32 %v276, 0.0
    %294 = vst [vmem:[#allocation2] sm:$0xff] %v278
    %295 = vst [vmem:[#allocation2 + $0x8] sm:$0xff] %v279
    %296 = vst [vmem:[#allocation2 + $0x10] sm:$0xff] %v280
    %297 = vst [vmem:[#allocation2 + $0x18] sm:$0xff] %v281
    %298 = vst [vmem:[#allocation2 + $0x20] sm:$0xff] %v282
    %299 = vst [vmem:[#allocation2 + $0x28] sm:$0xff] %v283
    %300 = vst [vmem:[#allocation2 + $0x30] sm:$0xff] %v284
    %301 = vst [vmem:[#allocation2 + $0x38] sm:$0xff] %v285
    %302 = vst [vmem:[#allocation2 + $0x40] sm:$0xff] %v286
    %303 = vst [vmem:[#allocation2 + $0x48] sm:$0xff] %v287
    %304 = vst [vmem:[#allocation2 + $0x50] sm:$0xff] %v288
    %305 = vst [vmem:[#allocation2 + $0x58] sm:$0xff] %v289
    %306 = vst [vmem:[#allocation2 + $0x60] sm:$0xff] %v290
    %307 = vst [vmem:[#allocation2 + $0x68] sm:$0xff] %v291
    %308 = vst [vmem:[#allocation2 + $0x70] sm:$0xff] %v292
    %309 = vst [vmem:[#allocation2 + $0x78] sm:$0xff] %v293
    // Predicated region
    $region14: #{tpu_custom_call.1} parent=1 // pred_check
      _
    $region15: #{tpu_custom_call.1} parent=1 // pred_check_branch
      %311 = sbr.rel (0) target = $region17
    $region16: #{tpu_custom_call.1} parent=1 // pred_region
      %313 = vsyncadd [#allocation3], 0
      %s314 = sshll.u32 [#allocation2], 4
      %s315 = int_to_ptr.vmem [resolvable:$true] %s314
      %s316 = sshll.u32 %s3, 4
      %s317 = int_to_ptr.hbm [resolvable:$true] %s316
      %322 = dma.vmem_to_hbm [thread:$0]  %s315, 2048, %s317, [#allocation3], 128, 128, 8
    $region17: #{tpu_custom_call.1} parent=1 // pred_fallthru
      _
    // Predicated region
    $region18: #{tpu_custom_call.1} parent=1 // pred_check
      _
    $region19: #{tpu_custom_call.1} parent=1 // pred_check_branch
      %324 = sbr.rel (0) target = $region21
    $region20: #{tpu_custom_call.1} parent=1 // pred_region
      %326 = dma.done [#allocation3], 2048
    $region21: #{tpu_custom_call.1} parent=1 // pred_fallthru
      _
    %327 = vsyncpa [#allocation3], 1

</llo_original>
